<compile_context>
chip_gen: v7x
topology: tpu7x:2x2x1
jax: 0.10.0
libtpu: 0.0.40
codegen_flags: <defaults>
</compile_context>

<pallas_src>
import functools

import jax
import jax.numpy as jnp
import numpy as np
from jax import lax
from jax.experimental import pallas as pl
from jax.experimental.pallas import tpu as pltpu

LN_EPS = 1e-6


# --------------------------------- kernel ------------------------------------

def ffn_kernel(x_ref, g_ref, beta_ref, w1_ref, b1_ref, w2_ref, b2_ref,
               out_ref, acc_ref, xn_ref, *, n_chunks):
    """One row-tile grid step.

    x_ref   : [TM, D]             bf16/f32 activations (row tile)
    g_ref   : [1, D]              f32  LayerNorm gamma
    beta_ref: [1, D]              f32  LayerNorm beta
    w1_ref  : [n_chunks, TF, D]   bf16 W1 (PyTorch [out,in] layout, chunked on d_ff) — VMEM resident
    b1_ref  : [n_chunks, 1, TF]   f32  b1 chunks
    w2_ref  : [n_chunks, TF, D]   bf16 W2 ([in,out] layout, chunked on d_ff) — VMEM resident
    b2_ref  : [1, D]              f32
    out_ref : [TM, D]             same dtype as x
    acc_ref : [TM, D]             f32  VMEM scratch accumulator (multi-chunk path)
    xn_ref  : [TM, D]             bf16 VMEM scratch, LayerNorm(x) cast once for the MXU
    """
    # ---- LayerNorm (f32 math regardless of activation dtype) ----
    x = x_ref[...].astype(jnp.float32)
    mean = jnp.mean(x, axis=-1, keepdims=True)
    var = jnp.mean((x - mean) ** 2, axis=-1, keepdims=True)
    xn = (x - mean) * lax.rsqrt(var + LN_EPS) * g_ref[...] + beta_ref[...]
    xn_ref[...] = xn.astype(jnp.bfloat16)          # bf16 MXU operand, cast once

    def chunk(c):
        # inter_c = relu(xn @ W1_c^T + b1_c)   — W1 stored [d_ff, D], contract on D.
        inter = jnp.einsum("md,fd->mf", xn_ref[...], w1_ref[c],
                           preferred_element_type=jnp.float32) + b1_ref[c]
        inter = jnp.maximum(inter, 0.0)
        # partial = inter_c @ W2_c             — bf16 in, f32 accumulate.
        return jnp.dot(inter.astype(jnp.bfloat16), w2_ref[c],
                       preferred_element_type=jnp.float32)

    if n_chunks == 1:
        # Fast path: no accumulator round-trip through VMEM.
        y = chunk(0)
    else:
        acc_ref[...] = jnp.zeros_like(acc_ref)

        def body(c, carry):
            acc_ref[...] += chunk(c)
            return carry

        lax.fori_loop(0, n_chunks, body, 0, unroll=n_chunks <= 4)
        y = acc_ref[...]

    # Fused b2 + pre-LN residual, lane-dense store (D is a multiple of 128).
    out_ref[...] = (y + b2_ref[...] + x_ref[...].astype(jnp.float32)).astype(out_ref.dtype)


# -------------------------------- wrapper ------------------------------------

def positionwise_feed_forward(x, params, *, tile_m=256, tile_ff=512):
    """out = W2(relu(W1(LayerNorm(x)) + b1)) + b2 + x.

    params (stored in their final dtypes at init — no per-call casts):
      w1   : [d_ff, d_model] bf16   (PyTorch nn.Linear layout; contracted on d_model)
      b1   : [d_ff]          f32
      w2   : [d_ff, d_model] bf16   ([in, out] layout; contracted on d_ff)
      b2   : [d_model]       f32
      ln_g : [d_model]       f32
      ln_b : [d_model]       f32
    """
    B, T, D = x.shape
    d_ff = params["w1"].shape[0]
    rows = B * T

    tm = min(tile_m, rows)
    tf = min(tile_ff, d_ff)
    n_chunks = d_ff // tf
    assert rows % tm == 0, "rows must be divisible by tile_m"
    assert d_ff % tf == 0, "d_ff must be divisible by tile_ff"
    assert D % 128 == 0 and tf % 128 == 0 and tm % 16 == 0, \
        "D/tf must be multiples of 128, tm a multiple of 16 (bf16 sublane packing)"

    # Metadata-only reshapes (no dtype casts, no transposes): the chunk axis becomes
    # the leading dim so the kernel indexes weight chunks with ref[c].
    x2 = x.reshape(rows, D)
    w1c = params["w1"].reshape(n_chunks, tf, D)
    w2c = params["w2"].reshape(n_chunks, tf, D)
    b1c = params["b1"].reshape(n_chunks, 1, tf)
    b2 = params["b2"].reshape(1, D)
    g = params["ln_g"].reshape(1, D)
    beta = params["ln_b"].reshape(1, D)

    grid = (rows // tm,)

    act_bytes = x.dtype.itemsize
    w_bytes = params["w1"].dtype.itemsize
    flops = 4 * rows * D * d_ff                                   # two matmuls
    bytes_accessed = (2 * rows * D * act_bytes                    # x in + out
                      + 2 * d_ff * D * w_bytes                    # W1 + W2 (resident: once)
                      + (d_ff + 3 * D) * 4)                       # biases + LN params
    cost = pl.CostEstimate(flops=flops, transcendentals=rows,
                           bytes_accessed=bytes_accessed)

    # VMEM budget: double-buffered x/out tiles + resident weights (allow 2 buffers
    # each) + scratches + inter temporaries; clamp to 64 MiB (v7x per-TC VMEM).
    vmem_est = (4 * tm * D * act_bytes
                + 2 * 2 * d_ff * D * w_bytes
                + 2 * (d_ff + 3 * D) * 4
                + tm * D * 4 + tm * D * 2
                + 2 * tm * tf * 4)
    vmem_limit = int(min(max(vmem_est + (4 << 20), 32 << 20), 64 << 20))

    kernel = functools.partial(ffn_kernel, n_chunks=n_chunks)

    out2 = pl.pallas_call(
        kernel,
        out_shape=jax.ShapeDtypeStruct((rows, D), x.dtype),
        grid_spec=pltpu.PrefetchScalarGridSpec(
            num_scalar_prefetch=0,
            grid=grid,
            in_specs=[
                pl.BlockSpec((tm, D), lambda i: (i, 0)),                # x row tile
                pl.BlockSpec((1, D), lambda i: (0, 0)),                 # LN gamma
                pl.BlockSpec((1, D), lambda i: (0, 0)),                 # LN beta
                pl.BlockSpec((n_chunks, tf, D), lambda i: (0, 0, 0)),   # W1 (resident)
                pl.BlockSpec((n_chunks, 1, tf), lambda i: (0, 0, 0)),   # b1 chunks
                pl.BlockSpec((n_chunks, tf, D), lambda i: (0, 0, 0)),   # W2 (resident)
                pl.BlockSpec((1, D), lambda i: (0, 0)),                 # b2
            ],
            out_specs=pl.BlockSpec((tm, D), lambda i: (i, 0)),
            scratch_shapes=[pltpu.VMEM((tm, D), jnp.float32),           # acc
                            pltpu.VMEM((tm, D), jnp.bfloat16)],         # LayerNorm(x) bf16
        ),
        compiler_params=pltpu.CompilerParams(
            dimension_semantics=("parallel",),
            vmem_limit_bytes=vmem_limit),
        cost_estimate=cost,
    )(x2, g, beta, w1c, b1c, w2c, b2)

    return out2.reshape(B, T, D)


# ------------------------- pure-JAX reference (check) -------------------------

def ref_forward(x, params):
    # Uses the same bf16-rounded weights/activations so the comparison is tight;
    # the bf16 cast of the ReLU output inside the kernel is intentional (MXU input).
    xf = x.astype(jnp.float32)
    w1 = params["w1"].astype(jnp.float32)   # [d_ff, D]
    w2 = params["w2"].astype(jnp.float32)   # [d_ff, D]
    m = jnp.mean(xf, -1, keepdims=True)
    v = jnp.mean((xf - m) ** 2, -1, keepdims=True)
    xn = (xf - m) / jnp.sqrt(v + LN_EPS) * params["ln_g"] + params["ln_b"]
    inter = jax.nn.relu(
        jnp.einsum("btd,fd->btf", xn, w1, precision="highest") + params["b1"])
    out = jnp.einsum("btf,fd->btd", inter, w2, precision="highest") + params["b2"]
    return out + xf


# ---------------------------------- main --------------------------------------

if __name__ == "__main__":
    # Small but lane-dense shapes (d_model / d_ff multiples of 128).
    B, T, D, D_FF = 2, 16, 128, 512

    key = jax.random.PRNGKey(0)
    ks = jax.random.split(key, 7)
    sc = 0.05
    # Weights are stored in bf16 once at "init" — no per-call casts in the wrapper.
    params = {
        "w1":   (sc * jax.random.normal(ks[0], (D_FF, D), jnp.float32)).astype(jnp.bfloat16),
        "b1":   sc * jax.random.normal(ks[1], (D_FF,), jnp.float32),
        "w2":   (sc * jax.random.normal(ks[2], (D_FF, D), jnp.float32)).astype(jnp.bfloat16),
        "b2":   sc * jax.random.normal(ks[3], (D,), jnp.float32),
        "ln_g": 1.0 + 0.1 * jax.random.normal(ks[4], (D,), jnp.float32),
        "ln_b": 0.1 * jax.random.normal(ks[5], (D,), jnp.float32),
    }
    x = jax.random.normal(ks[6], (B, T, D), jnp.float32).astype(jnp.bfloat16)

    ref = np.asarray(ref_forward(x, params))

    # (tile_m=16, tile_ff=256): grid=(2,), 2 d_ff chunks -> exercises the in-kernel
    #   reduction loop and multiple row tiles.
    # (tile_m=32, tile_ff=512): grid=(1,), single chunk -> exercises the fast path.
    for tile_m, tile_ff in ((16, 256), (32, 512)):
        out = positionwise_feed_forward(x, params, tile_m=tile_m, tile_ff=tile_ff)
        out = jax.block_until_ready(out)
        np.testing.assert_allclose(np.asarray(out).astype(np.float32), ref,
                                   rtol=2e-2, atol=2e-2)

    print("KERNEL_OK")
</pallas_src>

<mosaic_0001>
module attributes {stable_mosaic.version = 11 : i64} {
  func.func @ffn_kernel(%arg0: i32, %arg1: memref<16x128xbf16, #tpu.memory_space<vmem>>, %arg2: memref<1x128xf32, #tpu.memory_space<vmem>>, %arg3: memref<1x128xf32, #tpu.memory_space<vmem>>, %arg4: memref<2x256x128xbf16, #tpu.memory_space<vmem>>, %arg5: memref<2x1x256xf32, #tpu.memory_space<vmem>>, %arg6: memref<2x256x128xbf16, #tpu.memory_space<vmem>>, %arg7: memref<1x128xf32, #tpu.memory_space<vmem>>, %arg8: memref<16x128xbf16, #tpu.memory_space<vmem>>, %arg9: memref<16x128xf32, #tpu.memory_space<vmem>>, %arg10: memref<16x128xbf16, #tpu.memory_space<vmem>>) attributes {dimension_semantics = [#tpu.dimension_semantics<parallel>], iteration_bounds = array<i64: 2>, scalar_prefetch = 0 : i64, scratch_operands = 2 : i64, tpu.core_type = #tpu.core_type<tc>, window_params = [{transform_indices = @transform_0, window_bounds = array<i64: 16, 128>}, {pipeline_mode = #tpu.pipeline_mode<synchronous>, transform_indices = @transform_1, window_bounds = array<i64: 1, 128>}, {pipeline_mode = #tpu.pipeline_mode<synchronous>, transform_indices = @transform_2, window_bounds = array<i64: 1, 128>}, {pipeline_mode = #tpu.pipeline_mode<synchronous>, transform_indices = @transform_3, window_bounds = array<i64: 2, 256, 128>}, {pipeline_mode = #tpu.pipeline_mode<synchronous>, transform_indices = @transform_4, window_bounds = array<i64: 2, 1, 256>}, {pipeline_mode = #tpu.pipeline_mode<synchronous>, transform_indices = @transform_5, window_bounds = array<i64: 2, 256, 128>}, {pipeline_mode = #tpu.pipeline_mode<synchronous>, transform_indices = @transform_6, window_bounds = array<i64: 1, 128>}, {transform_indices = @transform_7, window_bounds = array<i64: 16, 128>}]} {
    %c0 = arith.constant 0 : index
    %c0_0 = arith.constant 0 : index
    %0 = vector.load %arg1[%c0, %c0_0] : memref<16x128xbf16, #tpu.memory_space<vmem>>, vector<16x128xbf16>
    %1 = arith.extf %0 : vector<16x128xbf16> to vector<16x128xf32>
    %cst = arith.constant dense<0.000000e+00> : vector<16xf32>
    %2 = vector.multi_reduction <add>, %1, %cst [1] : vector<16x128xf32> to vector<16xf32>
    %3 = vector.shape_cast %2 : vector<16xf32> to vector<16x1xf32>
    %cst_1 = arith.constant 1.280000e+02 : f32
    %4 = vector.broadcast %cst_1 : f32 to vector<16x1xf32>
    %5 = arith.divf %3, %4 : vector<16x1xf32>
    %6 = vector.broadcast %5 : vector<16x1xf32> to vector<16x128xf32>
    %7 = arith.subf %1, %6 : vector<16x128xf32>
    %8 = arith.mulf %7, %7 : vector<16x128xf32>
    %cst_2 = arith.constant dense<0.000000e+00> : vector<16xf32>
    %9 = vector.multi_reduction <add>, %8, %cst_2 [1] : vector<16x128xf32> to vector<16xf32>
    %10 = vector.shape_cast %9 : vector<16xf32> to vector<16x1xf32>
    %cst_3 = arith.constant 1.280000e+02 : f32
    %11 = vector.broadcast %cst_3 : f32 to vector<16x1xf32>
    %12 = arith.divf %10, %11 : vector<16x1xf32>
    %13 = vector.broadcast %5 : vector<16x1xf32> to vector<16x128xf32>
    %14 = arith.subf %1, %13 : vector<16x128xf32>
    %cst_4 = arith.constant 9.99999997E-7 : f32
    %15 = vector.broadcast %cst_4 : f32 to vector<16x1xf32>
    %16 = arith.addf %12, %15 : vector<16x1xf32>
    %17 = math.rsqrt %16 : vector<16x1xf32>
    %18 = vector.broadcast %17 : vector<16x1xf32> to vector<16x128xf32>
    %19 = arith.mulf %14, %18 : vector<16x128xf32>
    %c0_5 = arith.constant 0 : index
    %c0_6 = arith.constant 0 : index
    %20 = vector.load %arg2[%c0_5, %c0_6] : memref<1x128xf32, #tpu.memory_space<vmem>>, vector<1x128xf32>
    %21 = vector.broadcast %20 : vector<1x128xf32> to vector<16x128xf32>
    %22 = arith.mulf %19, %21 : vector<16x128xf32>
    %c0_7 = arith.constant 0 : index
    %c0_8 = arith.constant 0 : index
    %23 = vector.load %arg3[%c0_7, %c0_8] : memref<1x128xf32, #tpu.memory_space<vmem>>, vector<1x128xf32>
    %24 = vector.broadcast %23 : vector<1x128xf32> to vector<16x128xf32>
    %25 = arith.addf %22, %24 : vector<16x128xf32>
    %26 = arith.truncf %25 : vector<16x128xf32> to vector<16x128xbf16>
    %c0_9 = arith.constant 0 : index
    %c0_10 = arith.constant 0 : index
    %27 = vector.load %arg10[%c0_9, %c0_10] : memref<16x128xbf16, #tpu.memory_space<vmem>>, vector<16x128xbf16>
    tpu.vector_store %arg10[%c0_9, %c0_10], %26 {strides = array<i32>} : memref<16x128xbf16, #tpu.memory_space<vmem>>, vector<16x128xbf16>,
    %cst_11 = arith.constant 0.000000e+00 : f32
    %28 = vector.broadcast %cst_11 : f32 to vector<16x128xf32>
    %c0_12 = arith.constant 0 : index
    %c0_13 = arith.constant 0 : index
    %29 = vector.load %arg9[%c0_12, %c0_13] : memref<16x128xf32, #tpu.memory_space<vmem>>, vector<16x128xf32>
    tpu.vector_store %arg9[%c0_12, %c0_13], %28 {strides = array<i32>} : memref<16x128xf32, #tpu.memory_space<vmem>>, vector<16x128xf32>,
    %c0_i32 = arith.constant 0 : i32
    %c0_14 = arith.constant 0 : index
    %c0_15 = arith.constant 0 : index
    %30 = vector.load %arg9[%c0_14, %c0_15] : memref<16x128xf32, #tpu.memory_space<vmem>>, vector<16x128xf32>
    %c0_16 = arith.constant 0 : index
    %c0_17 = arith.constant 0 : index
    %31 = vector.load %arg10[%c0_16, %c0_17] : memref<16x128xbf16, #tpu.memory_space<vmem>>, vector<16x128xbf16>
    %32 = arith.index_cast %c0_i32 : i32 to index
    %c0_18 = arith.constant 0 : index
    %c0_19 = arith.constant 0 : index
    %33 = vector.load %arg4[%32, %c0_18, %c0_19] : memref<2x256x128xbf16, #tpu.memory_space<vmem>>, vector<1x256x128xbf16>
    %34 = vector.shape_cast %33 : vector<1x256x128xbf16> to vector<256x128xbf16>
    "tpu.trace_start"() <{level = 10 : i32, message = "md,fd->mf"}> : () -> ()
    %cst_20 = arith.constant dense<0.000000e+00> : vector<16x256xf32>
    %35 = tpu.matmul %31, %34, %cst_20 {dimension_numbers = #tpu.dot_dimension_numbers<[1], [1], [0], [0], [0, 0, 1, 0], [], []>} : vector<16x128xbf16>, vector<256x128xbf16>, vector<16x256xf32> -> vector<16x256xf32>
    "tpu.trace_stop"() : () -> ()
    %36 = arith.index_cast %c0_i32 : i32 to index
    %c0_21 = arith.constant 0 : index
    %c0_22 = arith.constant 0 : index
    %37 = vector.load %arg5[%36, %c0_21, %c0_22] : memref<2x1x256xf32, #tpu.memory_space<vmem>>, vector<1x1x256xf32>
    %38 = vector.shape_cast %37 : vector<1x1x256xf32> to vector<1x256xf32>
    %39 = vector.broadcast %38 : vector<1x256xf32> to vector<16x256xf32>
    %40 = arith.addf %35, %39 : vector<16x256xf32>
    %cst_23 = arith.constant 0.000000e+00 : f32
    %41 = vector.broadcast %cst_23 : f32 to vector<16x256xf32>
    %42 = arith.maximumf %40, %41 : vector<16x256xf32>
    %43 = arith.truncf %42 : vector<16x256xf32> to vector<16x256xbf16>
    %44 = arith.index_cast %c0_i32 : i32 to index
    %c0_24 = arith.constant 0 : index
    %c0_25 = arith.constant 0 : index
    %45 = vector.load %arg6[%44, %c0_24, %c0_25] : memref<2x256x128xbf16, #tpu.memory_space<vmem>>, vector<1x256x128xbf16>
    %46 = vector.shape_cast %45 : vector<1x256x128xbf16> to vector<256x128xbf16>
    %cst_26 = arith.constant dense<0.000000e+00> : vector<16x128xf32>
    %47 = tpu.matmul %43, %46, %cst_26 {dimension_numbers = #tpu.dot_dimension_numbers<[1], [0], [0], [1], [0, 0, 1, 1], [], []>} : vector<16x256xbf16>, vector<256x128xbf16>, vector<16x128xf32> -> vector<16x128xf32>
    %48 = arith.addf %30, %47 : vector<16x128xf32>
    %c0_27 = arith.constant 0 : index
    %c0_28 = arith.constant 0 : index
    %49 = vector.load %arg9[%c0_27, %c0_28] : memref<16x128xf32, #tpu.memory_space<vmem>>, vector<16x128xf32>
    tpu.vector_store %arg9[%c0_27, %c0_28], %48 {strides = array<i32>} : memref<16x128xf32, #tpu.memory_space<vmem>>, vector<16x128xf32>,
    %c1_i32 = arith.constant 1 : i32
    %c0_29 = arith.constant 0 : index
    %c0_30 = arith.constant 0 : index
    %50 = vector.load %arg9[%c0_29, %c0_30] : memref<16x128xf32, #tpu.memory_space<vmem>>, vector<16x128xf32>
    %c0_31 = arith.constant 0 : index
    %c0_32 = arith.constant 0 : index
    %51 = vector.load %arg10[%c0_31, %c0_32] : memref<16x128xbf16, #tpu.memory_space<vmem>>, vector<16x128xbf16>
    %52 = arith.index_cast %c1_i32 : i32 to index
    %c0_33 = arith.constant 0 : index
    %c0_34 = arith.constant 0 : index
    %53 = vector.load %arg4[%52, %c0_33, %c0_34] : memref<2x256x128xbf16, #tpu.memory_space<vmem>>, vector<1x256x128xbf16>
    %54 = vector.shape_cast %53 : vector<1x256x128xbf16> to vector<256x128xbf16>
    "tpu.trace_start"() <{level = 10 : i32, message = "md,fd->mf"}> : () -> ()
    %cst_35 = arith.constant dense<0.000000e+00> : vector<16x256xf32>
    %55 = tpu.matmul %51, %54, %cst_35 {dimension_numbers = #tpu.dot_dimension_numbers<[1], [1], [0], [0], [0, 0, 1, 0], [], []>} : vector<16x128xbf16>, vector<256x128xbf16>, vector<16x256xf32> -> vector<16x256xf32>
    "tpu.trace_stop"() : () -> ()
    %56 = arith.index_cast %c1_i32 : i32 to index
    %c0_36 = arith.constant 0 : index
    %c0_37 = arith.constant 0 : index
    %57 = vector.load %arg5[%56, %c0_36, %c0_37] : memref<2x1x256xf32, #tpu.memory_space<vmem>>, vector<1x1x256xf32>
    %58 = vector.shape_cast %57 : vector<1x1x256xf32> to vector<1x256xf32>
    %59 = vector.broadcast %58 : vector<1x256xf32> to vector<16x256xf32>
    %60 = arith.addf %55, %59 : vector<16x256xf32>
    %cst_38 = arith.constant 0.000000e+00 : f32
    %61 = vector.broadcast %cst_38 : f32 to vector<16x256xf32>
    %62 = arith.maximumf %60, %61 : vector<16x256xf32>
    %63 = arith.truncf %62 : vector<16x256xf32> to vector<16x256xbf16>
    %64 = arith.index_cast %c1_i32 : i32 to index
    %c0_39 = arith.constant 0 : index
    %c0_40 = arith.constant 0 : index
    %65 = vector.load %arg6[%64, %c0_39, %c0_40] : memref<2x256x128xbf16, #tpu.memory_space<vmem>>, vector<1x256x128xbf16>
    %66 = vector.shape_cast %65 : vector<1x256x128xbf16> to vector<256x128xbf16>
    %cst_41 = arith.constant dense<0.000000e+00> : vector<16x128xf32>
    %67 = tpu.matmul %63, %66, %cst_41 {dimension_numbers = #tpu.dot_dimension_numbers<[1], [0], [0], [1], [0, 0, 1, 1], [], []>} : vector<16x256xbf16>, vector<256x128xbf16>, vector<16x128xf32> -> vector<16x128xf32>
    %68 = arith.addf %50, %67 : vector<16x128xf32>
    %c0_42 = arith.constant 0 : index
    %c0_43 = arith.constant 0 : index
    %69 = vector.load %arg9[%c0_42, %c0_43] : memref<16x128xf32, #tpu.memory_space<vmem>>, vector<16x128xf32>
    tpu.vector_store %arg9[%c0_42, %c0_43], %68 {strides = array<i32>} : memref<16x128xf32, #tpu.memory_space<vmem>>, vector<16x128xf32>,
    %c2_i32 = arith.constant 2 : i32
    %c0_44 = arith.constant 0 : index
    %c0_45 = arith.constant 0 : index
    %70 = vector.load %arg9[%c0_44, %c0_45] : memref<16x128xf32, #tpu.memory_space<vmem>>, vector<16x128xf32>
    %c0_46 = arith.constant 0 : index
    %c0_47 = arith.constant 0 : index
    %71 = vector.load %arg7[%c0_46, %c0_47] : memref<1x128xf32, #tpu.memory_space<vmem>>, vector<1x128xf32>
    %72 = vector.broadcast %71 : vector<1x128xf32> to vector<16x128xf32>
    %73 = arith.addf %70, %72 : vector<16x128xf32>
    %c0_48 = arith.constant 0 : index
    %c0_49 = arith.constant 0 : index
    %74 = vector.load %arg1[%c0_48, %c0_49] : memref<16x128xbf16, #tpu.memory_space<vmem>>, vector<16x128xbf16>
    %75 = arith.extf %74 : vector<16x128xbf16> to vector<16x128xf32>
    %76 = arith.addf %73, %75 : vector<16x128xf32>
    %77 = arith.truncf %76 : vector<16x128xf32> to vector<16x128xbf16>
    %c0_50 = arith.constant 0 : index
    %c0_51 = arith.constant 0 : index
    %78 = vector.load %arg8[%c0_50, %c0_51] : memref<16x128xbf16, #tpu.memory_space<vmem>>, vector<16x128xbf16>
    tpu.vector_store %arg8[%c0_50, %c0_51], %77 {strides = array<i32>} : memref<16x128xbf16, #tpu.memory_space<vmem>>, vector<16x128xbf16>,
    return
  }
  func.func @transform_0(%arg0: i32) -> (i32, i32) {
    %c0_i32 = arith.constant 0 : i32
    %c0_i32_0 = arith.constant 0 : i32
    return %arg0, %c0_i32 : i32, i32
  }
  func.func @transform_1(%arg0: i32) -> (i32, i32) {
    %c0_i32 = arith.constant 0 : i32
    %c0_i32_0 = arith.constant 0 : i32
    %c0_i32_1 = arith.constant 0 : i32
    return %c0_i32, %c0_i32_0 : i32, i32
  }
  func.func @transform_2(%arg0: i32) -> (i32, i32) {
    %c0_i32 = arith.constant 0 : i32
    %c0_i32_0 = arith.constant 0 : i32
    %c0_i32_1 = arith.constant 0 : i32
    return %c0_i32, %c0_i32_0 : i32, i32
  }
  func.func @transform_3(%arg0: i32) -> (i32, i32, i32) {
    %c0_i32 = arith.constant 0 : i32
    %c0_i32_0 = arith.constant 0 : i32
    %c0_i32_1 = arith.constant 0 : i32
    %c0_i32_2 = arith.constant 0 : i32
    return %c0_i32, %c0_i32_0, %c0_i32_1 : i32, i32, i32
  }
  func.func @transform_4(%arg0: i32) -> (i32, i32, i32) {
    %c0_i32 = arith.constant 0 : i32
    %c0_i32_0 = arith.constant 0 : i32
    %c0_i32_1 = arith.constant 0 : i32
    %c0_i32_2 = arith.constant 0 : i32
    return %c0_i32, %c0_i32_0, %c0_i32_1 : i32, i32, i32
  }
  func.func @transform_5(%arg0: i32) -> (i32, i32, i32) {
    %c0_i32 = arith.constant 0 : i32
    %c0_i32_0 = arith.constant 0 : i32
    %c0_i32_1 = arith.constant 0 : i32
    %c0_i32_2 = arith.constant 0 : i32
    return %c0_i32, %c0_i32_0, %c0_i32_1 : i32, i32, i32
  }
  func.func @transform_6(%arg0: i32) -> (i32, i32) {
    %c0_i32 = arith.constant 0 : i32
    %c0_i32_0 = arith.constant 0 : i32
    %c0_i32_1 = arith.constant 0 : i32
    return %c0_i32, %c0_i32_0 : i32, i32
  }
  func.func @transform_7(%arg0: i32) -> (i32, i32) {
    %c0_i32 = arith.constant 0 : i32
    %c0_i32_0 = arith.constant 0 : i32
    return %arg0, %c0_i32 : i32, i32
  }
}

</mosaic_0001>

<llo_original>
// kernel: tpu_custom_call.1
$region0: #{tpu_custom_call.1}
  #allocation0 [shape = 'u32[]', space=smem, size = 0x4, offset = 0x4, fixed_abs, tag = 'smem constant byte address 0x4 - core index']
  #allocation1 [shape = 'u32[144,128]{1,0:T(1,128)}', space=vmem, size = 0x12000, scoped, tag = 'internal scratch']
  #allocation2 [shape = 'f32[16,128]{1,0:T(8,128)}', space=vmem, size = 0x2000, scoped, tag = 'scratch operand']
  #allocation3 [shape = 'bf16[16,128]{1,0:T(16,128)(2,1)}', space=vmem, size = 0x1000, scoped, tag = 'scratch operand']
  %s0 = inlined_call_operand.hbm [shape: bf16[32,128], index: 0, kind: input, shape index: {}]
  %s1 = inlined_call_operand.vmem [shape: f32[1,128], index: 1, kind: input, shape index: {}]
  %s2 = inlined_call_operand.vmem [shape: f32[1,128], index: 2, kind: input, shape index: {}]
  %s3 = inlined_call_operand.hbm [shape: bf16[2,256,128], index: 3, kind: input, shape index: {}]
  %s4 = inlined_call_operand.vmem [shape: f32[2,1,256], index: 4, kind: input, shape index: {}]
  %s5 = inlined_call_operand.hbm [shape: bf16[2,256,128], index: 5, kind: input, shape index: {}]
  %s6 = inlined_call_operand.vmem [shape: f32[1,128], index: 6, kind: input, shape index: {}]
  %s7 = inlined_call_operand.hbm [shape: bf16[32,128], index: 7, kind: output, shape index: {}]
  %s8 = sld [smem:[#allocation0]]
  $region73: #{tpu_custom_call.1} parent=0
    _
  %s10 = ssub.s32 1, %s8
  %s11 = scalar_select 0, %s10, %s8
  $region1: #{tpu_custom_call.1} parent=0
    #allocation4 [shape = 'u8[8192]{0}', space=vmem, size = 0x2000, scoped, tag = 'input window, operand 0']
    #allocation5 [shape = 's32[2]{0}', space=sflag, size = 0x8, scoped, tag = 'scoped memory for tpu_custom_call.1']
    #allocation6 [shape = 's32[2]{0}', space=sflag, size = 0x8, scoped, tag = 'scoped memory for tpu_custom_call.1']
    #allocation7 [shape = 'u8[131072]{0}', space=vmem, size = 0x20000, scoped, tag = 'input window, operand 3, single buffered']
    #allocation8 [shape = 's32[1]{0}', space=sflag, size = 0x4, scoped, tag = 'scoped memory for tpu_custom_call.1']
    #allocation9 [shape = 'u8[131072]{0}', space=vmem, size = 0x20000, scoped, tag = 'input window, operand 5, single buffered']
    #allocation10 [shape = 'u8[8192]{0}', space=vmem, size = 0x2000, scoped, tag = 'output window, operand 0']
    %12 = vsyncpa [#allocation5], 0
    %s13 = scalar_lea.sflag [#allocation5], 1
    %14 = vsyncpa %s13, 0
    %15 = vsyncpa [#allocation8], 0
    %16 = vsyncpa [#allocation6], 0
    %s17 = scalar_lea.sflag [#allocation6], 1
    %18 = vsyncpa %s17, 0
    loop: start=0, step=1, limit=4
    $region2: #{tpu_custom_call.1} parent=1 // loop_pre_header
      _
    $region3: #{tpu_custom_call.1} parent=1 // loop_header
      %s20 = sphi 0, %s24
      %p21 = scmp.ge.s32.totalorder %s20, 4
      %s30 = sphi 0, %s32
      %s33 = sphi 0, %s30
      %s34 = sphi 0, %s33
      %s50 = sphi 0, %s34
      %s54 = sphi 0, %s54
      %s56 = sphi 0, %s54
      %s57 = sphi 0, %s56
      %s71 = sphi 0, %s57
      %s75 = sphi 0, %s75
      %s77 = sphi 0, %s75
      %s78 = sphi 0, %s77
      %s92 = sphi 0, %s78
      %s96 = sphi 0, %s96
      %s98 = sphi 0, %s96
      %s99 = sphi 0, %s98
      %s113 = sphi 0, %s99
      %s117 = sphi 0, %s117
      %s119 = sphi 0, %s117
      %s120 = sphi 0, %s119
      %s134 = sphi 0, %s120
      %s138 = sphi 0, %s138
      %s140 = sphi 0, %s138
      %s141 = sphi 0, %s140
      %s155 = sphi 0, %s141
      %s159 = sphi 0, %s159
      %s161 = sphi 0, %s159
      %s162 = sphi 0, %s161
      %s176 = sphi 0, %s162
      %s182 = sphi 0, %s184
      %s185 = sphi 0, %s182
      %s186 = sphi 0, %s185
      %s202 = sphi 0, %s186
    $region4: #{tpu_custom_call.1} parent=1 // loop_header_branch
      %23 = sbr.rel (%p21) target = $region8
    $region5: #{tpu_custom_call.1} parent=1 // loop_body
      %s25 = ssub.s32 %s20, 1
      %s26 = ssub.s32 %s20, 2
      %s27 = sadd.s32 %s20, 1
      %s28 = ssub.s32 %s20, %s27
      %p29 = scmp.eq.s32.totalorder %s28, 0
      %s31 = sadd.s32 %s30, 1
      %s32 = scalar_select %p29, %s30, %s31
      %p35 = pneg %p29
      %p36 = scmp.eq.s32.totalorder %s20, 1
      %p37 = por %p35, %p36
      %p38 = scmp.ne.s32.totalorder %s30, %s33
      %p39 = scmp.eq.s32.totalorder %s20, 0
      %p40 = por %p38, %p39
      %p41 = scmp.ne.s32.totalorder %s30, %s33
      %p42 = scmp.eq.s32.totalorder %s25, 1
      %p43 = por %p41, %p42
      %p44 = scmp.ne.s32.totalorder %s33, %s34
      %p45 = scmp.eq.s32.totalorder %s25, 0
      %p46 = por %p44, %p45
      %p47 = scmp.ne.s32.totalorder %s33, %s34
      %p48 = scmp.eq.s32.totalorder %s26, 1
      %p49 = por %p47, %p48
      %p51 = scmp.ne.s32.totalorder %s34, %s50
      %p52 = scmp.eq.s32.totalorder %s26, 0
      %p53 = por %p51, %p52
      %s55 = sadd.s32 %s54, 1
      %p58 = scmp.eq.s32.totalorder %s20, 1
      %p59 = scmp.ne.s32.totalorder %s54, %s56
      %p60 = scmp.eq.s32.totalorder %s20, 0
      %p61 = por %p59, %p60
      %p62 = scmp.ne.s32.totalorder %s54, %s56
      %p63 = scmp.eq.s32.totalorder %s25, 1
      %p64 = por %p62, %p63
      %p65 = scmp.ne.s32.totalorder %s56, %s57
      %p66 = scmp.eq.s32.totalorder %s25, 0
      %p67 = por %p65, %p66
      %p68 = scmp.ne.s32.totalorder %s56, %s57
      %p69 = scmp.eq.s32.totalorder %s26, 1
      %p70 = por %p68, %p69
      %p72 = scmp.ne.s32.totalorder %s57, %s71
      %p73 = scmp.eq.s32.totalorder %s26, 0
      %p74 = por %p72, %p73
      %s76 = sadd.s32 %s75, 1
      %p79 = scmp.eq.s32.totalorder %s20, 1
      %p80 = scmp.ne.s32.totalorder %s75, %s77
      %p81 = scmp.eq.s32.totalorder %s20, 0
      %p82 = por %p80, %p81
      %p83 = scmp.ne.s32.totalorder %s75, %s77
      %p84 = scmp.eq.s32.totalorder %s25, 1
      %p85 = por %p83, %p84
      %p86 = scmp.ne.s32.totalorder %s77, %s78
      %p87 = scmp.eq.s32.totalorder %s25, 0
      %p88 = por %p86, %p87
      %p89 = scmp.ne.s32.totalorder %s77, %s78
      %p90 = scmp.eq.s32.totalorder %s26, 1
      %p91 = por %p89, %p90
      %p93 = scmp.ne.s32.totalorder %s78, %s92
      %p94 = scmp.eq.s32.totalorder %s26, 0
      %p95 = por %p93, %p94
      %s97 = sadd.s32 %s96, 1
      %p100 = scmp.eq.s32.totalorder %s20, 1
      %p101 = scmp.ne.s32.totalorder %s96, %s98
      %p102 = scmp.eq.s32.totalorder %s20, 0
      %p103 = por %p101, %p102
      %p104 = scmp.ne.s32.totalorder %s96, %s98
      %p105 = scmp.eq.s32.totalorder %s25, 1
      %p106 = por %p104, %p105
      %p107 = scmp.ne.s32.totalorder %s98, %s99
      %p108 = scmp.eq.s32.totalorder %s25, 0
      %p109 = por %p107, %p108
      %p110 = scmp.ne.s32.totalorder %s98, %s99
      %p111 = scmp.eq.s32.totalorder %s26, 1
      %p112 = por %p110, %p111
      %p114 = scmp.ne.s32.totalorder %s99, %s113
      %p115 = scmp.eq.s32.totalorder %s26, 0
      %p116 = por %p114, %p115
      %s118 = sadd.s32 %s117, 1
      %p121 = scmp.eq.s32.totalorder %s20, 1
      %p122 = scmp.ne.s32.totalorder %s117, %s119
      %p123 = scmp.eq.s32.totalorder %s20, 0
      %p124 = por %p122, %p123
      %p125 = scmp.ne.s32.totalorder %s117, %s119
      %p126 = scmp.eq.s32.totalorder %s25, 1
      %p127 = por %p125, %p126
      %p128 = scmp.ne.s32.totalorder %s119, %s120
      %p129 = scmp.eq.s32.totalorder %s25, 0
      %p130 = por %p128, %p129
      %p131 = scmp.ne.s32.totalorder %s119, %s120
      %p132 = scmp.eq.s32.totalorder %s26, 1
      %p133 = por %p131, %p132
      %p135 = scmp.ne.s32.totalorder %s120, %s134
      %p136 = scmp.eq.s32.totalorder %s26, 0
      %p137 = por %p135, %p136
      %s139 = sadd.s32 %s138, 1
      %p142 = scmp.eq.s32.totalorder %s20, 1
      %p143 = scmp.ne.s32.totalorder %s138, %s140
      %p144 = scmp.eq.s32.totalorder %s20, 0
      %p145 = por %p143, %p144
      %p146 = scmp.ne.s32.totalorder %s138, %s140
      %p147 = scmp.eq.s32.totalorder %s25, 1
      %p148 = por %p146, %p147
      %p149 = scmp.ne.s32.totalorder %s140, %s141
      %p150 = scmp.eq.s32.totalorder %s25, 0
      %p151 = por %p149, %p150
      %p152 = scmp.ne.s32.totalorder %s140, %s141
      %p153 = scmp.eq.s32.totalorder %s26, 1
      %p154 = por %p152, %p153
      %p156 = scmp.ne.s32.totalorder %s141, %s155
      %p157 = scmp.eq.s32.totalorder %s26, 0
      %p158 = por %p156, %p157
      %s160 = sadd.s32 %s159, 1
      %p163 = scmp.eq.s32.totalorder %s20, 1
      %p164 = scmp.ne.s32.totalorder %s159, %s161
      %p165 = scmp.eq.s32.totalorder %s20, 0
      %p166 = por %p164, %p165
      %p167 = scmp.ne.s32.totalorder %s159, %s161
      %p168 = scmp.eq.s32.totalorder %s25, 1
      %p169 = por %p167, %p168
      %p170 = scmp.ne.s32.totalorder %s161, %s162
      %p171 = scmp.eq.s32.totalorder %s25, 0
      %p172 = por %p170, %p171
      %p173 = scmp.ne.s32.totalorder %s161, %s162
      %p174 = scmp.eq.s32.totalorder %s26, 1
      %p175 = por %p173, %p174
      %p177 = scmp.ne.s32.totalorder %s162, %s176
      %p178 = scmp.eq.s32.totalorder %s26, 0
      %p179 = por %p177, %p178
      %s180 = ssub.s32 %s20, %s27
      %p181 = scmp.eq.s32.totalorder %s180, 0
      %s183 = sadd.s32 %s182, 1
      %s184 = scalar_select %p181, %s182, %s183
      %p187 = pneg %p181
      %p188 = scmp.eq.s32.totalorder %s20, 1
      %p189 = por %p187, %p188
      %p190 = scmp.ne.s32.totalorder %s182, %s185
      %p191 = scmp.eq.s32.totalorder %s20, 0
      %p192 = por %p190, %p191
      %p193 = scmp.ne.s32.totalorder %s182, %s185
      %p194 = scmp.eq.s32.totalorder %s25, 1
      %p195 = por %p193, %p194
      %p196 = scmp.ne.s32.totalorder %s185, %s186
      %p197 = scmp.eq.s32.totalorder %s25, 0
      %p198 = por %p196, %p197
      %p199 = scmp.ne.s32.totalorder %s185, %s186
      %p200 = scmp.eq.s32.totalorder %s26, 1
      %p201 = por %p199, %p200
      %p203 = scmp.ne.s32.totalorder %s186, %s202
      %p204 = scmp.eq.s32.totalorder %s26, 0
      %p205 = por %p203, %p204
      %p206 = scmp.le.s32.totalorder 1, %s20
      %p207 = scmp.lt.s32.totalorder %s20, 3
      %p208 = pnand %p206, %p207
      %p209 = pneg %p208
      // Predicated region
      $region9: #{tpu_custom_call.1} parent=5 // pred_check
        _
      $region10: #{tpu_custom_call.1} parent=5 // pred_check_branch
        %211 = sbr.rel (%p208) target = $region12
      $region11: #{tpu_custom_call.1} parent=5 // pred_region
        %s212 = ssub.s32 %s20, 1
        // Predicated region
        $region13: #{tpu_custom_call.1} parent=11 // pred_check
          %p213 = pneg %p67
        $region14: #{tpu_custom_call.1} parent=11 // pred_check_branch
          %215 = sbr.rel (%p213) target = $region16
        $region15: #{tpu_custom_call.1} parent=11 // pred_region
          _
        $region16: #{tpu_custom_call.1} parent=11 // pred_fallthru
          _
        // Predicated region
        $region17: #{tpu_custom_call.1} parent=11 // pred_check
          %p216 = pneg %p88
        $region18: #{tpu_custom_call.1} parent=11 // pred_check_branch
          %218 = sbr.rel (%p216) target = $region20
        $region19: #{tpu_custom_call.1} parent=11 // pred_region
          _
        $region20: #{tpu_custom_call.1} parent=11 // pred_fallthru
          _
        // Predicated region
        $region21: #{tpu_custom_call.1} parent=11 // pred_check
          %p219 = pneg %p109
        $region22: #{tpu_custom_call.1} parent=11 // pred_check_branch
          %221 = sbr.rel (%p219) target = $region24
        $region23: #{tpu_custom_call.1} parent=11 // pred_region
          %s223 = ssub.s32 4096, 4096
          %224 = vsyncadd [#allocation8], %s223
          %s225 = sshll.u32 [#allocation7], 4
          %s226 = int_to_ptr.vmem [resolvable:$true] %s225
          %231 = dma.hbm_to_vmem [thread:$0]  %s3, 4096, %s226, [#allocation8], 64, 64, 4
        $region24: #{tpu_custom_call.1} parent=11 // pred_fallthru
          _
        // Predicated region
        $region25: #{tpu_custom_call.1} parent=11 // pred_check
          %p232 = pneg %p130
        $region26: #{tpu_custom_call.1} parent=11 // pred_check_branch
          %234 = sbr.rel (%p232) target = $region28
        $region27: #{tpu_custom_call.1} parent=11 // pred_region
          _
        $region28: #{tpu_custom_call.1} parent=11 // pred_fallthru
          _
        // Predicated region
        $region29: #{tpu_custom_call.1} parent=11 // pred_check
          %p235 = pneg %p151
        $region30: #{tpu_custom_call.1} parent=11 // pred_check_branch
          %237 = sbr.rel (%p235) target = $region32
        $region31: #{tpu_custom_call.1} parent=11 // pred_region
          %s239 = ssub.s32 4096, 4096
          %240 = vsyncadd [#allocation8], %s239
          %s241 = sshll.u32 [#allocation9], 4
          %s242 = int_to_ptr.vmem [resolvable:$true] %s241
          %247 = dma.hbm_to_vmem [thread:$0]  %s5, 4096, %s242, [#allocation8], 64, 64, 4
        $region32: #{tpu_custom_call.1} parent=11 // pred_fallthru
          _
        // Predicated region
        $region33: #{tpu_custom_call.1} parent=11 // pred_check
          %p248 = pneg %p172
        $region34: #{tpu_custom_call.1} parent=11 // pred_check_branch
          %250 = sbr.rel (%p248) target = $region36
        $region35: #{tpu_custom_call.1} parent=11 // pred_region
          _
        $region36: #{tpu_custom_call.1} parent=11 // pred_fallthru
          _
      $region12: #{tpu_custom_call.1} parent=5 // pred_fallthru
        _
      %p251 = scmp.lt.s32.totalorder %s20, 2
      // Predicated region
      $region37: #{tpu_custom_call.1} parent=5 // pred_check
        %p252 = pneg %p251
      $region38: #{tpu_custom_call.1} parent=5 // pred_check_branch
        %254 = sbr.rel (%p252) target = $region40
      $region39: #{tpu_custom_call.1} parent=5 // pred_region
        // Predicated region
        $region41: #{tpu_custom_call.1} parent=39 // pred_check
          %p255 = pneg %p40
        $region42: #{tpu_custom_call.1} parent=39 // pred_check_branch
          %257 = sbr.rel (%p255) target = $region44
        $region43: #{tpu_custom_call.1} parent=39 // pred_region
          %s258 = sand.u32 %s30, 1
          %s259 = scalar_lea.sflag [#allocation5], %s258
          %s260 = sand.u32 %s30, 1
          %s261 = smul.addr %s260, 8
          %s262 = scalar_lea.vmem [#allocation4], %s261
          %s263 = smul.u32 2, %s20
          %s265 = ssub.s32 128, 128
          %266 = vsyncadd %s259, %s265
          %s267 = smul.addr %s263, 64
          %s268 = scalar_lea.hbm %s0, %s267
          %s269 = sshll.u32 %s262, 4
          %s270 = int_to_ptr.vmem [resolvable:$true] %s269
          %275 = dma.hbm_to_vmem [thread:$0]  %s268, 128, %s270, %s259, 64, 64, 4
        $region44: #{tpu_custom_call.1} parent=39 // pred_fallthru
          _
      $region40: #{tpu_custom_call.1} parent=5 // pred_fallthru
        _
      %p276 = scmp.le.s32.totalorder 1, %s20
      %p277 = scmp.lt.s32.totalorder %s20, 3
      %p278 = pnand %p276, %p277
      %p279 = pneg %p278
      // Predicated region
      $region45: #{tpu_custom_call.1} parent=5 // pred_check
        _
      $region46: #{tpu_custom_call.1} parent=5 // pred_check_branch
        %281 = sbr.rel (%p278) target = $region48
      $region47: #{tpu_custom_call.1} parent=5 // pred_region
        %s282 = ssub.s32 %s20, 1
        %s283 = sand.u32 %s33, 1
        %s284 = scalar_lea.sflag [#allocation5], %s283
        %s285 = sand.u32 %s33, 1
        %s286 = smul.addr %s285, 8
        %s287 = scalar_lea.vmem [#allocation4], %s286
        // Predicated region
        $region49: #{tpu_custom_call.1} parent=47 // pred_check
          %p288 = pneg %p46
        $region50: #{tpu_custom_call.1} parent=47 // pred_check_branch
          %290 = sbr.rel (%p288) target = $region52
        $region51: #{tpu_custom_call.1} parent=47 // pred_region
          %291 = dma.done %s284, 128
        $region52: #{tpu_custom_call.1} parent=47 // pred_fallthru
          _
        // Predicated region
        $region53: #{tpu_custom_call.1} parent=47 // pred_check
          %p292 = pneg %p109
        $region54: #{tpu_custom_call.1} parent=47 // pred_check_branch
          %294 = sbr.rel (%p292) target = $region56
        $region55: #{tpu_custom_call.1} parent=47 // pred_region
          %295 = dma.done [#allocation8], 4096
        $region56: #{tpu_custom_call.1} parent=47 // pred_fallthru
          _
        // Predicated region
        $region57: #{tpu_custom_call.1} parent=47 // pred_check
          %p296 = pneg %p151
        $region58: #{tpu_custom_call.1} parent=47 // pred_check_branch
          %298 = sbr.rel (%p296) target = $region60
        $region59: #{tpu_custom_call.1} parent=47 // pred_region
          %299 = dma.done [#allocation8], 4096
        $region60: #{tpu_custom_call.1} parent=47 // pred_fallthru
          _
        %s300 = sand.u32 %s33, 1
        %s301 = scalar_lea.sflag [#allocation5], %s300
        %s302 = sand.u32 %s33, 1
        %s303 = smul.addr %s302, 8
        %s304 = scalar_lea.vmem [#allocation4], %s303
        %p305 = pneg %p46
        %p306 = pneg %p43
        %p307 = pneg %p67
        %p308 = pneg %p64
        %p309 = pneg %p88
        %p310 = pneg %p85
        %p311 = pneg %p109
        %p312 = pneg %p106
        %p313 = pneg %p130
        %p314 = pneg %p127
        %p315 = pneg %p151
        %p316 = pneg %p148
        %p317 = pneg %p172
        %p318 = pneg %p169
        %p319 = pneg %p198
        %p320 = pneg %p195
        %s321 = sand.u32 %s185, 1
        %s322 = scalar_lea.sflag [#allocation6], %s321
        %s323 = sand.u32 %s185, 1
        %s324 = smul.addr %s323, 8
        %s325 = scalar_lea.vmem [#allocation10], %s324
        %s326 = smul.u32 2, %s25
        %s327 = smul.u32 2, %s25
        %v329 = vld [vmem:[%s287] sm:$0xf]
        %v330 = vld [vmem:[%s287 + $0x4] sm:$0xf]
        %v331 = vunpack.c.l.bf16 %v329
        %v332 = vunpack.c.l.bf16 %v330
        %333 = vadd.xlane.f32.xlu0 %v331
        %v334 = vpop.xlane.xlu0 %333
        %335 = vadd.xlane.f32.xlu0 %v332
        %v336 = vpop.xlane.xlu0 %335
        %v337 = vrcp.pop 128.0
        %v338 = vmul.f32 %v334, %v337
        %v339 = vmul.f32 %v336, %v337
        %v340 = vsub.f32 %v331, %v338
        %v341 = vsub.f32 %v332, %v339
        %v342 = vmul.f32 %v340, %v340
        %v343 = vmul.f32 %v341, %v341
        %344 = vadd.xlane.f32.xlu0 %v342
        %v345 = vpop.xlane.xlu0 %344
        %346 = vadd.xlane.f32.xlu0 %v343
        %v347 = vpop.xlane.xlu0 %346
        %v348 = vmul.f32 %v345, %v337
        %v349 = vmul.f32 %v347, %v337
        %v350 = vadd.f32 %v348, 1e-06
        %v351 = vadd.f32 %v349, 1e-06
        %v352 = vrsqrt.pop %v350
        %v353 = vrsqrt.pop %v351
        %v354 = vmul.f32 %v340, %v352
        %v355 = vmul.f32 %v341, %v353
        %v356 = vld [vmem:[%s1] sm:$0x1]
        %v358 = vlaneseq
        %v359 = vshrl.u32 %v358, 7
        %v360 = vsub.s32 0, %v359
        %v361 = vrot.slane %v356, %v360
        %v363 = vmul.f32 %v354, %v361
        %v364 = vmul.f32 %v355, %v361
        %v365 = vld [vmem:[%s2] sm:$0x1]
        %v367 = vlaneseq
        %v368 = vshrl.u32 %v367, 7
        %v369 = vsub.s32 0, %v368
        %v370 = vrot.slane %v365, %v369
        %v372 = vadd.f32 %v363, %v370
        %v373 = vadd.f32 %v364, %v370
        %v374 = vpack.c.bf16 %v373, %v372
        %375 = vst [vmem:[#allocation3] sm:$0xff] %v374
        %376 = vst [vmem:[#allocation2] sm:$0xff] 0.0
        %377 = vst [vmem:[#allocation2 + $0x8] sm:$0xff] 0.0
        %v378 = vld [vmem:[#allocation2] sm:$0xff]
        %v379 = vld [vmem:[#allocation2 + $0x8] sm:$0xff]
        %v380 = vld [vmem:[#allocation3] sm:$0xff]
        %v381 = vld [vmem:[#allocation7] sm:$0xf]
        %v382 = vld [vmem:[#allocation7 + $0x4] sm:$0xf]
        %v383 = vld [vmem:[#allocation7 + $0x8] sm:$0xf]
        %v384 = vld [vmem:[#allocation7 + $0xc] sm:$0xf]
        %v385 = vld [vmem:[#allocation7 + $0x10] sm:$0xf]
        %v386 = vld [vmem:[#allocation7 + $0x14] sm:$0xf]
        %v387 = vld [vmem:[#allocation7 + $0x18] sm:$0xf]
        %v388 = vld [vmem:[#allocation7 + $0x1c] sm:$0xf]
        %v389 = vld [vmem:[#allocation7 + $0x20] sm:$0xf]
        %v390 = vld [vmem:[#allocation7 + $0x24] sm:$0xf]
        %v391 = vld [vmem:[#allocation7 + $0x28] sm:$0xf]
        %v392 = vld [vmem:[#allocation7 + $0x2c] sm:$0xf]
        %v393 = vld [vmem:[#allocation7 + $0x30] sm:$0xf]
        %v394 = vld [vmem:[#allocation7 + $0x34] sm:$0xf]
        %v395 = vld [vmem:[#allocation7 + $0x38] sm:$0xf]
        %v396 = vld [vmem:[#allocation7 + $0x3c] sm:$0xf]
        %v397 = vld [vmem:[#allocation7 + $0x40] sm:$0xf]
        %v398 = vld [vmem:[#allocation7 + $0x44] sm:$0xf]
        %v399 = vld [vmem:[#allocation7 + $0x48] sm:$0xf]
        %v400 = vld [vmem:[#allocation7 + $0x4c] sm:$0xf]
        %v401 = vld [vmem:[#allocation7 + $0x50] sm:$0xf]
        %v402 = vld [vmem:[#allocation7 + $0x54] sm:$0xf]
        %v403 = vld [vmem:[#allocation7 + $0x58] sm:$0xf]
        %v404 = vld [vmem:[#allocation7 + $0x5c] sm:$0xf]
        %v405 = vld [vmem:[#allocation7 + $0x60] sm:$0xf]
        %v406 = vld [vmem:[#allocation7 + $0x64] sm:$0xf]
        %v407 = vld [vmem:[#allocation7 + $0x68] sm:$0xf]
        %v408 = vld [vmem:[#allocation7 + $0x6c] sm:$0xf]
        %v409 = vld [vmem:[#allocation7 + $0x70] sm:$0xf]
        %v410 = vld [vmem:[#allocation7 + $0x74] sm:$0xf]
        %v411 = vld [vmem:[#allocation7 + $0x78] sm:$0xf]
        %v412 = vld [vmem:[#allocation7 + $0x7c] sm:$0xf]
        %v413 = vld [vmem:[%s4] sm:$0x3]
        %v415 = vlaneseq
        %v416 = vshrl.u32 %v415, 7
        %v417 = vsub.s32 0, %v416
        %v418 = vrot.slane %v413, %v417
        %v419 = vlaneseq
        %v420 = vshrl.u32 %v419, 7
        %v421 = vsub.s32 1, %v420
        %v422 = vrot.slane %v413, %v421
        %v457 = vunpack.c.l.b16 %v381
        %v458 = vunpack.c.l.b16 %v382
        %v459 = vunpack.c.l.b16 %v383
        %v460 = vunpack.c.l.b16 %v384
        %v461 = vunpack.c.l.b16 %v385
        %v462 = vunpack.c.l.b16 %v386
        %v463 = vunpack.c.l.b16 %v387
        %v464 = vunpack.c.l.b16 %v388
        %v465 = vunpack.c.l.b16 %v389
        %v466 = vunpack.c.l.b16 %v390
        %v467 = vunpack.c.l.b16 %v391
        %v468 = vunpack.c.l.b16 %v392
        %v469 = vunpack.c.l.b16 %v393
        %v470 = vunpack.c.l.b16 %v394
        %v471 = vunpack.c.l.b16 %v395
        %v472 = vunpack.c.l.b16 %v396
        %v473 = vunpack.c.l.b16 %v397
        %v474 = vunpack.c.l.b16 %v398
        %v475 = vunpack.c.l.b16 %v399
        %v476 = vunpack.c.l.b16 %v400
        %v477 = vunpack.c.l.b16 %v401
        %v478 = vunpack.c.l.b16 %v402
        %v479 = vunpack.c.l.b16 %v403
        %v480 = vunpack.c.l.b16 %v404
        %v481 = vunpack.c.l.b16 %v405
        %v482 = vunpack.c.l.b16 %v406
        %v483 = vunpack.c.l.b16 %v407
        %v484 = vunpack.c.l.b16 %v408
        %v485 = vunpack.c.l.b16 %v409
        %v486 = vunpack.c.l.b16 %v410
        %v487 = vunpack.c.l.b16 %v411
        %v488 = vunpack.c.l.b16 %v412
        %v489 = vpack.c.b16 %v458, %v457
        %v490 = vpack.c.b16 %v460, %v459
        %v491 = vpack.c.b16 %v462, %v461
        %v492 = vpack.c.b16 %v464, %v463
        %v493 = vpack.c.b16 %v466, %v465
        %v494 = vpack.c.b16 %v468, %v467
        %v495 = vpack.c.b16 %v470, %v469
        %v496 = vpack.c.b16 %v472, %v471
        %v497 = vpack.c.b16 %v474, %v473
        %v498 = vpack.c.b16 %v476, %v475
        %v499 = vpack.c.b16 %v478, %v477
        %v500 = vpack.c.b16 %v480, %v479
        %v501 = vpack.c.b16 %v482, %v481
        %v502 = vpack.c.b16 %v484, %v483
        %v503 = vpack.c.b16 %v486, %v485
        %v504 = vpack.c.b16 %v488, %v487
        %521 = vmatprep.subr.bf16.mxu0 0
        %522 = vmatpush1.bf16.xpose.msra.mxu0 %v489
        %523 = vmatprep.subr.bf16.mxu0 0
        %524 = vmatpush1.bf16.xpose.msra.mxu0 %v490
        %525 = vmatprep.subr.bf16.mxu0 0
        %526 = vmatpush1.bf16.xpose.msra.mxu0 %v491
        %527 = vmatprep.subr.bf16.mxu0 0
        %528 = vmatpush1.bf16.xpose.msra.mxu0 %v492
        %529 = vmatprep.subr.bf16.mxu0 0
        %530 = vmatpush1.bf16.xpose.msra.mxu0 %v493
        %531 = vmatprep.subr.bf16.mxu0 0
        %532 = vmatpush1.bf16.xpose.msra.mxu0 %v494
        %533 = vmatprep.subr.bf16.mxu0 0
        %534 = vmatpush1.bf16.xpose.msra.mxu0 %v495
        %535 = vmatprep.subr.bf16.mxu0 0
        %536 = vmatpush1.bf16.xpose.msra.mxu0 %v496
        %537 = vmatprep.subr.bf16.mxu0 0
        %538 = vmatpush1.bf16.xpose.msra.mxu0 %v497
        %539 = vmatprep.subr.bf16.mxu0 0
        %540 = vmatpush1.bf16.xpose.msra.mxu0 %v498
        %541 = vmatprep.subr.bf16.mxu0 0
        %542 = vmatpush1.bf16.xpose.msra.mxu0 %v499
        %543 = vmatprep.subr.bf16.mxu0 0
        %544 = vmatpush1.bf16.xpose.msra.mxu0 %v500
        %545 = vmatprep.subr.bf16.mxu0 0
        %546 = vmatpush1.bf16.xpose.msra.mxu0 %v501
        %547 = vmatprep.subr.bf16.mxu0 0
        %548 = vmatpush1.bf16.xpose.msra.mxu0 %v502
        %549 = vmatprep.subr.bf16.mxu0 0
        %550 = vmatpush1.bf16.xpose.msra.mxu0 %v503
        %551 = vmatprep.subr.bf16.mxu0 0
        %552 = vmatpush1.bf16.xpose.msra.mxu0 %v504
        %553 = vmatprep.mubr.bf16.mxu0 0
        %554 = vmatmul.mubr.bf16.gmra.mrb[0].mxu0 %v380
        %v555 = vpop.f32.mrb[0].mxu0
        %v556 = vadd.f32 %v418, %v555
        %v557 = vpop.f32.mrb[0].mxu0
        %v558 = vadd.f32 %v422, %v557
        %v559 = vpop.f32.mrb[0].mxu0
        %v560 = vadd.f32 %v418, %v559
        %v561 = vpop.f32.mrb[0].mxu0
        %v562 = vadd.f32 %v422, %v561
        %563 = vdwg.mxu0
        %v564 = vmax.f32 %v556, 0.0
        %v565 = vmax.f32 %v558, 0.0
        %v566 = vmax.f32 %v560, 0.0
        %v567 = vmax.f32 %v562, 0.0
        %v568 = vpack.c.bf16 %v566, %v564
        %v569 = vpack.c.bf16 %v567, %v565
        %v570 = vld [vmem:[#allocation9] sm:$0xf]
        %v571 = vld [vmem:[#allocation9 + $0x4] sm:$0xf]
        %v572 = vld [vmem:[#allocation9 + $0x8] sm:$0xf]
        %v573 = vld [vmem:[#allocation9 + $0xc] sm:$0xf]
        %v574 = vld [vmem:[#allocation9 + $0x10] sm:$0xf]
        %v575 = vld [vmem:[#allocation9 + $0x14] sm:$0xf]
        %v576 = vld [vmem:[#allocation9 + $0x18] sm:$0xf]
        %v577 = vld [vmem:[#allocation9 + $0x1c] sm:$0xf]
        %v578 = vld [vmem:[#allocation9 + $0x20] sm:$0xf]
        %v579 = vld [vmem:[#allocation9 + $0x24] sm:$0xf]
        %v580 = vld [vmem:[#allocation9 + $0x28] sm:$0xf]
        %v581 = vld [vmem:[#allocation9 + $0x2c] sm:$0xf]
        %v582 = vld [vmem:[#allocation9 + $0x30] sm:$0xf]
        %v583 = vld [vmem:[#allocation9 + $0x34] sm:$0xf]
        %v584 = vld [vmem:[#allocation9 + $0x38] sm:$0xf]
        %v585 = vld [vmem:[#allocation9 + $0x3c] sm:$0xf]
        %v586 = vld [vmem:[#allocation9 + $0x40] sm:$0xf]
        %v587 = vld [vmem:[#allocation9 + $0x44] sm:$0xf]
        %v588 = vld [vmem:[#allocation9 + $0x48] sm:$0xf]
        %v589 = vld [vmem:[#allocation9 + $0x4c] sm:$0xf]
        %v590 = vld [vmem:[#allocation9 + $0x50] sm:$0xf]
        %v591 = vld [vmem:[#allocation9 + $0x54] sm:$0xf]
        %v592 = vld [vmem:[#allocation9 + $0x58] sm:$0xf]
        %v593 = vld [vmem:[#allocation9 + $0x5c] sm:$0xf]
        %v594 = vld [vmem:[#allocation9 + $0x60] sm:$0xf]
        %v595 = vld [vmem:[#allocation9 + $0x64] sm:$0xf]
        %v596 = vld [vmem:[#allocation9 + $0x68] sm:$0xf]
        %v597 = vld [vmem:[#allocation9 + $0x6c] sm:$0xf]
        %v598 = vld [vmem:[#allocation9 + $0x70] sm:$0xf]
        %v599 = vld [vmem:[#allocation9 + $0x74] sm:$0xf]
        %v600 = vld [vmem:[#allocation9 + $0x78] sm:$0xf]
        %v601 = vld [vmem:[#allocation9 + $0x7c] sm:$0xf]
        %v634 = vunpack.c.l.b16 %v570
        %v635 = vunpack.c.l.b16 %v571
        %v636 = vunpack.c.l.b16 %v572
        %v637 = vunpack.c.l.b16 %v573
        %v638 = vunpack.c.l.b16 %v574
        %v639 = vunpack.c.l.b16 %v575
        %v640 = vunpack.c.l.b16 %v576
        %v641 = vunpack.c.l.b16 %v577
        %v642 = vunpack.c.l.b16 %v578
        %v643 = vunpack.c.l.b16 %v579
        %v644 = vunpack.c.l.b16 %v580
        %v645 = vunpack.c.l.b16 %v581
        %v646 = vunpack.c.l.b16 %v582
        %v647 = vunpack.c.l.b16 %v583
        %v648 = vunpack.c.l.b16 %v584
        %v649 = vunpack.c.l.b16 %v585
        %v650 = vunpack.c.l.b16 %v586
        %v651 = vunpack.c.l.b16 %v587
        %v652 = vunpack.c.l.b16 %v588
        %v653 = vunpack.c.l.b16 %v589
        %v654 = vunpack.c.l.b16 %v590
        %v655 = vunpack.c.l.b16 %v591
        %v656 = vunpack.c.l.b16 %v592
        %v657 = vunpack.c.l.b16 %v593
        %v658 = vunpack.c.l.b16 %v594
        %v659 = vunpack.c.l.b16 %v595
        %v660 = vunpack.c.l.b16 %v596
        %v661 = vunpack.c.l.b16 %v597
        %v662 = vunpack.c.l.b16 %v598
        %v663 = vunpack.c.l.b16 %v599
        %v664 = vunpack.c.l.b16 %v600
        %v665 = vunpack.c.l.b16 %v601
        %v666 = vpack.c.b16 %v635, %v634
        %v667 = vpack.c.b16 %v637, %v636
        %v668 = vpack.c.b16 %v639, %v638
        %v669 = vpack.c.b16 %v641, %v640
        %v670 = vpack.c.b16 %v643, %v642
        %v671 = vpack.c.b16 %v645, %v644
        %v672 = vpack.c.b16 %v647, %v646
        %v673 = vpack.c.b16 %v649, %v648
        %v674 = vpack.c.b16 %v651, %v650
        %v675 = vpack.c.b16 %v653, %v652
        %v676 = vpack.c.b16 %v655, %v654
        %v677 = vpack.c.b16 %v657, %v656
        %v678 = vpack.c.b16 %v659, %v658
        %v679 = vpack.c.b16 %v661, %v660
        %v680 = vpack.c.b16 %v663, %v662
        %v681 = vpack.c.b16 %v665, %v664
        %698 = vmatprep.subr.bf16.mxu0 0
        %699 = vmatpush1.bf16.msra.mxu0 %v666
        %700 = vmatprep.subr.bf16.mxu0 0
        %701 = vmatpush1.bf16.msra.mxu0 %v667
        %702 = vmatprep.subr.bf16.mxu0 0
        %703 = vmatpush1.bf16.msra.mxu0 %v668
        %704 = vmatprep.subr.bf16.mxu0 0
        %705 = vmatpush1.bf16.msra.mxu0 %v669
        %706 = vmatprep.subr.bf16.mxu0 0
        %707 = vmatpush1.bf16.msra.mxu0 %v670
        %708 = vmatprep.subr.bf16.mxu0 0
        %709 = vmatpush1.bf16.msra.mxu0 %v671
        %710 = vmatprep.subr.bf16.mxu0 0
        %711 = vmatpush1.bf16.msra.mxu0 %v672
        %712 = vmatprep.subr.bf16.mxu0 0
        %713 = vmatpush1.bf16.msra.mxu0 %v673
        %714 = vmatprep.subr.bf16.mxu0 0
        %715 = vmatpush1.bf16.msra.mxu0 %v674
        %716 = vmatprep.subr.bf16.mxu0 0
        %717 = vmatpush1.bf16.msra.mxu0 %v675
        %718 = vmatprep.subr.bf16.mxu0 0
        %719 = vmatpush1.bf16.msra.mxu0 %v676
        %720 = vmatprep.subr.bf16.mxu0 0
        %721 = vmatpush1.bf16.msra.mxu0 %v677
        %722 = vmatprep.subr.bf16.mxu0 0
        %723 = vmatpush1.bf16.msra.mxu0 %v678
        %724 = vmatprep.subr.bf16.mxu0 0
        %725 = vmatpush1.bf16.msra.mxu0 %v679
        %726 = vmatprep.subr.bf16.mxu0 0
        %727 = vmatpush1.bf16.msra.mxu0 %v680
        %728 = vmatprep.subr.bf16.mxu0 0
        %729 = vmatpush1.bf16.msra.mxu0 %v681
        %730 = vmatprep.mubr.bf16.mxu0 %v569
        %731 = vmatmul.mubr.bf16.gmra.mrb[0].mxu0 %v568
        %v732 = vpop.f32.mrb[0].mxu0
        %v733 = vadd.f32 0.0, %v732
        %v734 = vpop.f32.mrb[0].mxu0
        %v735 = vpop.f32.mrb[0].mxu0
        %v736 = vadd.f32 0.0, %v735
        %v737 = vpop.f32.mrb[0].mxu0
        %738 = vdwg.mxu0
        %v739 = vadd.f32 %v378, %v733
        %v740 = vadd.f32 %v379, %v736
        %741 = vst [vmem:[#allocation2] sm:$0xff] %v739
        %742 = vst [vmem:[#allocation2 + $0x8] sm:$0xff] %v740
        %v743 = vld [vmem:[#allocation2] sm:$0xff]
        %v744 = vld [vmem:[#allocation2 + $0x8] sm:$0xff]
        %v745 = vld [vmem:[#allocation3] sm:$0xff]
        %s746 = scalar_lea.vmem [#allocation7], 128
        %v747 = vld [vmem:[%s746] sm:$0xf]
        %v748 = vld [vmem:[%s746 + $0x4] sm:$0xf]
        %v749 = vld [vmem:[%s746 + $0x8] sm:$0xf]
        %v750 = vld [vmem:[%s746 + $0xc] sm:$0xf]
        %v751 = vld [vmem:[%s746 + $0x10] sm:$0xf]
        %v752 = vld [vmem:[%s746 + $0x14] sm:$0xf]
        %v753 = vld [vmem:[%s746 + $0x18] sm:$0xf]
        %v754 = vld [vmem:[%s746 + $0x1c] sm:$0xf]
        %v755 = vld [vmem:[%s746 + $0x20] sm:$0xf]
        %v756 = vld [vmem:[%s746 + $0x24] sm:$0xf]
        %v757 = vld [vmem:[%s746 + $0x28] sm:$0xf]
        %v758 = vld [vmem:[%s746 + $0x2c] sm:$0xf]
        %v759 = vld [vmem:[%s746 + $0x30] sm:$0xf]
        %v760 = vld [vmem:[%s746 + $0x34] sm:$0xf]
        %v761 = vld [vmem:[%s746 + $0x38] sm:$0xf]
        %v762 = vld [vmem:[%s746 + $0x3c] sm:$0xf]
        %v763 = vld [vmem:[%s746 + $0x40] sm:$0xf]
        %v764 = vld [vmem:[%s746 + $0x44] sm:$0xf]
        %v765 = vld [vmem:[%s746 + $0x48] sm:$0xf]
        %v766 = vld [vmem:[%s746 + $0x4c] sm:$0xf]
        %v767 = vld [vmem:[%s746 + $0x50] sm:$0xf]
        %v768 = vld [vmem:[%s746 + $0x54] sm:$0xf]
        %v769 = vld [vmem:[%s746 + $0x58] sm:$0xf]
        %v770 = vld [vmem:[%s746 + $0x5c] sm:$0xf]
        %v771 = vld [vmem:[%s746 + $0x60] sm:$0xf]
        %v772 = vld [vmem:[%s746 + $0x64] sm:$0xf]
        %v773 = vld [vmem:[%s746 + $0x68] sm:$0xf]
        %v774 = vld [vmem:[%s746 + $0x6c] sm:$0xf]
        %v775 = vld [vmem:[%s746 + $0x70] sm:$0xf]
        %v776 = vld [vmem:[%s746 + $0x74] sm:$0xf]
        %v777 = vld [vmem:[%s746 + $0x78] sm:$0xf]
        %v778 = vld [vmem:[%s746 + $0x7c] sm:$0xf]
        %s779 = scalar_lea.vmem %s4, 2
        %v780 = vld [vmem:[%s779] sm:$0x3]
        %v782 = vlaneseq
        %v783 = vshrl.u32 %v782, 7
        %v784 = vsub.s32 0, %v783
        %v785 = vrot.slane %v780, %v784
        %v786 = vlaneseq
        %v787 = vshrl.u32 %v786, 7
        %v788 = vsub.s32 1, %v787
        %v789 = vrot.slane %v780, %v788
        %v824 = vunpack.c.l.b16 %v747
        %v825 = vunpack.c.l.b16 %v748
        %v826 = vunpack.c.l.b16 %v749
        %v827 = vunpack.c.l.b16 %v750
        %v828 = vunpack.c.l.b16 %v751
        %v829 = vunpack.c.l.b16 %v752
        %v830 = vunpack.c.l.b16 %v753
        %v831 = vunpack.c.l.b16 %v754
        %v832 = vunpack.c.l.b16 %v755
        %v833 = vunpack.c.l.b16 %v756
        %v834 = vunpack.c.l.b16 %v757
        %v835 = vunpack.c.l.b16 %v758
        %v836 = vunpack.c.l.b16 %v759
        %v837 = vunpack.c.l.b16 %v760
        %v838 = vunpack.c.l.b16 %v761
        %v839 = vunpack.c.l.b16 %v762
        %v840 = vunpack.c.l.b16 %v763
        %v841 = vunpack.c.l.b16 %v764
        %v842 = vunpack.c.l.b16 %v765
        %v843 = vunpack.c.l.b16 %v766
        %v844 = vunpack.c.l.b16 %v767
        %v845 = vunpack.c.l.b16 %v768
        %v846 = vunpack.c.l.b16 %v769
        %v847 = vunpack.c.l.b16 %v770
        %v848 = vunpack.c.l.b16 %v771
        %v849 = vunpack.c.l.b16 %v772
        %v850 = vunpack.c.l.b16 %v773
        %v851 = vunpack.c.l.b16 %v774
        %v852 = vunpack.c.l.b16 %v775
        %v853 = vunpack.c.l.b16 %v776
        %v854 = vunpack.c.l.b16 %v777
        %v855 = vunpack.c.l.b16 %v778
        %v856 = vpack.c.b16 %v825, %v824
        %v857 = vpack.c.b16 %v827, %v826
        %v858 = vpack.c.b16 %v829, %v828
        %v859 = vpack.c.b16 %v831, %v830
        %v860 = vpack.c.b16 %v833, %v832
        %v861 = vpack.c.b16 %v835, %v834
        %v862 = vpack.c.b16 %v837, %v836
        %v863 = vpack.c.b16 %v839, %v838
        %v864 = vpack.c.b16 %v841, %v840
        %v865 = vpack.c.b16 %v843, %v842
        %v866 = vpack.c.b16 %v845, %v844
        %v867 = vpack.c.b16 %v847, %v846
        %v868 = vpack.c.b16 %v849, %v848
        %v869 = vpack.c.b16 %v851, %v850
        %v870 = vpack.c.b16 %v853, %v852
        %v871 = vpack.c.b16 %v855, %v854
        %888 = vmatprep.subr.bf16.mxu0 0
        %889 = vmatpush1.bf16.xpose.msra.mxu0 %v856
        %890 = vmatprep.subr.bf16.mxu0 0
        %891 = vmatpush1.bf16.xpose.msra.mxu0 %v857
        %892 = vmatprep.subr.bf16.mxu0 0
        %893 = vmatpush1.bf16.xpose.msra.mxu0 %v858
        %894 = vmatprep.subr.bf16.mxu0 0
        %895 = vmatpush1.bf16.xpose.msra.mxu0 %v859
        %896 = vmatprep.subr.bf16.mxu0 0
        %897 = vmatpush1.bf16.xpose.msra.mxu0 %v860
        %898 = vmatprep.subr.bf16.mxu0 0
        %899 = vmatpush1.bf16.xpose.msra.mxu0 %v861
        %900 = vmatprep.subr.bf16.mxu0 0
        %901 = vmatpush1.bf16.xpose.msra.mxu0 %v862
        %902 = vmatprep.subr.bf16.mxu0 0
        %903 = vmatpush1.bf16.xpose.msra.mxu0 %v863
        %904 = vmatprep.subr.bf16.mxu0 0
        %905 = vmatpush1.bf16.xpose.msra.mxu0 %v864
        %906 = vmatprep.subr.bf16.mxu0 0
        %907 = vmatpush1.bf16.xpose.msra.mxu0 %v865
        %908 = vmatprep.subr.bf16.mxu0 0
        %909 = vmatpush1.bf16.xpose.msra.mxu0 %v866
        %910 = vmatprep.subr.bf16.mxu0 0
        %911 = vmatpush1.bf16.xpose.msra.mxu0 %v867
        %912 = vmatprep.subr.bf16.mxu0 0
        %913 = vmatpush1.bf16.xpose.msra.mxu0 %v868
        %914 = vmatprep.subr.bf16.mxu0 0
        %915 = vmatpush1.bf16.xpose.msra.mxu0 %v869
        %916 = vmatprep.subr.bf16.mxu0 0
        %917 = vmatpush1.bf16.xpose.msra.mxu0 %v870
        %918 = vmatprep.subr.bf16.mxu0 0
        %919 = vmatpush1.bf16.xpose.msra.mxu0 %v871
        %920 = vmatprep.mubr.bf16.mxu0 0
        %921 = vmatmul.mubr.bf16.gmra.mrb[0].mxu0 %v745
        %v922 = vpop.f32.mrb[0].mxu0
        %v923 = vadd.f32 %v785, %v922
        %v924 = vpop.f32.mrb[0].mxu0
        %v925 = vadd.f32 %v789, %v924
        %v926 = vpop.f32.mrb[0].mxu0
        %v927 = vadd.f32 %v785, %v926
        %v928 = vpop.f32.mrb[0].mxu0
        %v929 = vadd.f32 %v789, %v928
        %930 = vdwg.mxu0
        %v931 = vmax.f32 %v923, 0.0
        %v932 = vmax.f32 %v925, 0.0
        %v933 = vmax.f32 %v927, 0.0
        %v934 = vmax.f32 %v929, 0.0
        %v935 = vpack.c.bf16 %v933, %v931
        %v936 = vpack.c.bf16 %v934, %v932
        %s937 = scalar_lea.vmem [#allocation9], 128
        %v938 = vld [vmem:[%s937] sm:$0xf]
        %v939 = vld [vmem:[%s937 + $0x4] sm:$0xf]
        %v940 = vld [vmem:[%s937 + $0x8] sm:$0xf]
        %v941 = vld [vmem:[%s937 + $0xc] sm:$0xf]
        %v942 = vld [vmem:[%s937 + $0x10] sm:$0xf]
        %v943 = vld [vmem:[%s937 + $0x14] sm:$0xf]
        %v944 = vld [vmem:[%s937 + $0x18] sm:$0xf]
        %v945 = vld [vmem:[%s937 + $0x1c] sm:$0xf]
        %v946 = vld [vmem:[%s937 + $0x20] sm:$0xf]
        %v947 = vld [vmem:[%s937 + $0x24] sm:$0xf]
        %v948 = vld [vmem:[%s937 + $0x28] sm:$0xf]
        %v949 = vld [vmem:[%s937 + $0x2c] sm:$0xf]
        %v950 = vld [vmem:[%s937 + $0x30] sm:$0xf]
        %v951 = vld [vmem:[%s937 + $0x34] sm:$0xf]
        %v952 = vld [vmem:[%s937 + $0x38] sm:$0xf]
        %v953 = vld [vmem:[%s937 + $0x3c] sm:$0xf]
        %v954 = vld [vmem:[%s937 + $0x40] sm:$0xf]
        %v955 = vld [vmem:[%s937 + $0x44] sm:$0xf]
        %v956 = vld [vmem:[%s937 + $0x48] sm:$0xf]
        %v957 = vld [vmem:[%s937 + $0x4c] sm:$0xf]
        %v958 = vld [vmem:[%s937 + $0x50] sm:$0xf]
        %v959 = vld [vmem:[%s937 + $0x54] sm:$0xf]
        %v960 = vld [vmem:[%s937 + $0x58] sm:$0xf]
        %v961 = vld [vmem:[%s937 + $0x5c] sm:$0xf]
        %v962 = vld [vmem:[%s937 + $0x60] sm:$0xf]
        %v963 = vld [vmem:[%s937 + $0x64] sm:$0xf]
        %v964 = vld [vmem:[%s937 + $0x68] sm:$0xf]
        %v965 = vld [vmem:[%s937 + $0x6c] sm:$0xf]
        %v966 = vld [vmem:[%s937 + $0x70] sm:$0xf]
        %v967 = vld [vmem:[%s937 + $0x74] sm:$0xf]
        %v968 = vld [vmem:[%s937 + $0x78] sm:$0xf]
        %v969 = vld [vmem:[%s937 + $0x7c] sm:$0xf]
        %v1002 = vunpack.c.l.b16 %v938
        %v1003 = vunpack.c.l.b16 %v939
        %v1004 = vunpack.c.l.b16 %v940
        %v1005 = vunpack.c.l.b16 %v941
        %v1006 = vunpack.c.l.b16 %v942
        %v1007 = vunpack.c.l.b16 %v943
        %v1008 = vunpack.c.l.b16 %v944
        %v1009 = vunpack.c.l.b16 %v945
        %v1010 = vunpack.c.l.b16 %v946
        %v1011 = vunpack.c.l.b16 %v947
        %v1012 = vunpack.c.l.b16 %v948
        %v1013 = vunpack.c.l.b16 %v949
        %v1014 = vunpack.c.l.b16 %v950
        %v1015 = vunpack.c.l.b16 %v951
        %v1016 = vunpack.c.l.b16 %v952
        %v1017 = vunpack.c.l.b16 %v953
        %v1018 = vunpack.c.l.b16 %v954
        %v1019 = vunpack.c.l.b16 %v955
        %v1020 = vunpack.c.l.b16 %v956
        %v1021 = vunpack.c.l.b16 %v957
        %v1022 = vunpack.c.l.b16 %v958
        %v1023 = vunpack.c.l.b16 %v959
        %v1024 = vunpack.c.l.b16 %v960
        %v1025 = vunpack.c.l.b16 %v961
        %v1026 = vunpack.c.l.b16 %v962
        %v1027 = vunpack.c.l.b16 %v963
        %v1028 = vunpack.c.l.b16 %v964
        %v1029 = vunpack.c.l.b16 %v965
        %v1030 = vunpack.c.l.b16 %v966
        %v1031 = vunpack.c.l.b16 %v967
        %v1032 = vunpack.c.l.b16 %v968
        %v1033 = vunpack.c.l.b16 %v969
        %v1034 = vpack.c.b16 %v1003, %v1002
        %v1035 = vpack.c.b16 %v1005, %v1004
        %v1036 = vpack.c.b16 %v1007, %v1006
        %v1037 = vpack.c.b16 %v1009, %v1008
        %v1038 = vpack.c.b16 %v1011, %v1010
        %v1039 = vpack.c.b16 %v1013, %v1012
        %v1040 = vpack.c.b16 %v1015, %v1014
        %v1041 = vpack.c.b16 %v1017, %v1016
        %v1042 = vpack.c.b16 %v1019, %v1018
        %v1043 = vpack.c.b16 %v1021, %v1020
        %v1044 = vpack.c.b16 %v1023, %v1022
        %v1045 = vpack.c.b16 %v1025, %v1024
        %v1046 = vpack.c.b16 %v1027, %v1026
        %v1047 = vpack.c.b16 %v1029, %v1028
        %v1048 = vpack.c.b16 %v1031, %v1030
        %v1049 = vpack.c.b16 %v1033, %v1032
        %1066 = vmatprep.subr.bf16.mxu0 0
        %1067 = vmatpush1.bf16.msra.mxu0 %v1034
        %1068 = vmatprep.subr.bf16.mxu0 0
        %1069 = vmatpush1.bf16.msra.mxu0 %v1035
        %1070 = vmatprep.subr.bf16.mxu0 0
        %1071 = vmatpush1.bf16.msra.mxu0 %v1036
        %1072 = vmatprep.subr.bf16.mxu0 0
        %1073 = vmatpush1.bf16.msra.mxu0 %v1037
        %1074 = vmatprep.subr.bf16.mxu0 0
        %1075 = vmatpush1.bf16.msra.mxu0 %v1038
        %1076 = vmatprep.subr.bf16.mxu0 0
        %1077 = vmatpush1.bf16.msra.mxu0 %v1039
        %1078 = vmatprep.subr.bf16.mxu0 0
        %1079 = vmatpush1.bf16.msra.mxu0 %v1040
        %1080 = vmatprep.subr.bf16.mxu0 0
        %1081 = vmatpush1.bf16.msra.mxu0 %v1041
        %1082 = vmatprep.subr.bf16.mxu0 0
        %1083 = vmatpush1.bf16.msra.mxu0 %v1042
        %1084 = vmatprep.subr.bf16.mxu0 0
        %1085 = vmatpush1.bf16.msra.mxu0 %v1043
        %1086 = vmatprep.subr.bf16.mxu0 0
        %1087 = vmatpush1.bf16.msra.mxu0 %v1044
        %1088 = vmatprep.subr.bf16.mxu0 0
        %1089 = vmatpush1.bf16.msra.mxu0 %v1045
        %1090 = vmatprep.subr.bf16.mxu0 0
        %1091 = vmatpush1.bf16.msra.mxu0 %v1046
        %1092 = vmatprep.subr.bf16.mxu0 0
        %1093 = vmatpush1.bf16.msra.mxu0 %v1047
        %1094 = vmatprep.subr.bf16.mxu0 0
        %1095 = vmatpush1.bf16.msra.mxu0 %v1048
        %1096 = vmatprep.subr.bf16.mxu0 0
        %1097 = vmatpush1.bf16.msra.mxu0 %v1049
        %1098 = vmatprep.mubr.bf16.mxu0 %v936
        %1099 = vmatmul.mubr.bf16.gmra.mrb[0].mxu0 %v935
        %v1100 = vpop.f32.mrb[0].mxu0
        %v1101 = vadd.f32 0.0, %v1100
        %v1102 = vpop.f32.mrb[0].mxu0
        %v1103 = vpop.f32.mrb[0].mxu0
        %v1104 = vadd.f32 0.0, %v1103
        %v1105 = vpop.f32.mrb[0].mxu0
        %1106 = vdwg.mxu0
        %v1107 = vadd.f32 %v743, %v1101
        %v1108 = vadd.f32 %v744, %v1104
        %1109 = vst [vmem:[#allocation2] sm:$0xff] %v1107
        %1110 = vst [vmem:[#allocation2 + $0x8] sm:$0xff] %v1108
        %v1111 = vld [vmem:[#allocation2] sm:$0xff]
        %v1112 = vld [vmem:[#allocation2 + $0x8] sm:$0xff]
        %v1113 = vld [vmem:[%s6] sm:$0x1]
        %v1115 = vlaneseq
        %v1116 = vshrl.u32 %v1115, 7
        %v1117 = vsub.s32 0, %v1116
        %v1118 = vrot.slane %v1113, %v1117
        %v1120 = vadd.f32 %v1111, %v1118
        %v1121 = vadd.f32 %v1112, %v1118
        %v1122 = vld [vmem:[%s287] sm:$0xf]
        %v1123 = vld [vmem:[%s287 + $0x4] sm:$0xf]
        %v1124 = vunpack.c.l.bf16 %v1122
        %v1125 = vunpack.c.l.bf16 %v1123
        %v1126 = vadd.f32 %v1120, %v1124
        %v1127 = vadd.f32 %v1121, %v1125
        %v1128 = vpack.c.bf16 %v1127, %v1126
        %v1130 = vunpack.c.l.b16 %v1128
        %v1131 = vunpack.c.h.b16 %v1128
        %v1132 = vpack.c.b16 %v1130, %v1130
        %v1133 = vpack.c.b16 %v1131, %v1131
        %1136 = vst [vmem:[%s325] sm:$0xf] %v1132
        %1137 = vst [vmem:[%s325 + $0x4] sm:$0xf] %v1133
        %s1138 = sand.u32 %s185, 1
        %s1139 = scalar_lea.sflag [#allocation6], %s1138
        %s1140 = sand.u32 %s185, 1
        %s1141 = smul.addr %s1140, 8
        %s1142 = scalar_lea.vmem [#allocation10], %s1141
        // Predicated region
        $region61: #{tpu_custom_call.1} parent=47 // pred_check
          %p1143 = pneg %p195
        $region62: #{tpu_custom_call.1} parent=47 // pred_check_branch
          %1145 = sbr.rel (%p1143) target = $region64
        $region63: #{tpu_custom_call.1} parent=47 // pred_region
          %s1146 = smul.u32 2, %s25
          %s1148 = ssub.s32 128, 128
          %1149 = vsyncadd %s1139, %s1148
          %s1150 = smul.addr %s1146, 64
          %s1151 = scalar_lea.hbm %s7, %s1150
          %s1152 = sshll.u32 %s1142, 4
          %s1153 = int_to_ptr.vmem [resolvable:$true] %s1152
          %1158 = dma.vmem_to_hbm [thread:$0]  %s1153, 128, %s1151, %s1139, 64, 64, 4
        $region64: #{tpu_custom_call.1} parent=47 // pred_fallthru
          _
      $region48: #{tpu_custom_call.1} parent=5 // pred_fallthru
        _
      %p1159 = scmp.le.s32.totalorder 2, %s20
      // Predicated region
      $region65: #{tpu_custom_call.1} parent=5 // pred_check
        %p1160 = pneg %p1159
      $region66: #{tpu_custom_call.1} parent=5 // pred_check_branch
        %1162 = sbr.rel (%p1160) target = $region68
      $region67: #{tpu_custom_call.1} parent=5 // pred_region
        %s1163 = ssub.s32 %s20, 2
        // Predicated region
        $region69: #{tpu_custom_call.1} parent=67 // pred_check
          %p1164 = pneg %p201
        $region70: #{tpu_custom_call.1} parent=67 // pred_check_branch
          %1166 = sbr.rel (%p1164) target = $region72
        $region71: #{tpu_custom_call.1} parent=67 // pred_region
          %s1167 = sand.u32 %s186, 1
          %s1168 = scalar_lea.sflag [#allocation6], %s1167
          %s1169 = sand.u32 %s186, 1
          %s1170 = smul.addr %s1169, 8
          %s1171 = scalar_lea.vmem [#allocation10], %s1170
          %1172 = dma.done %s1168, 128
        $region72: #{tpu_custom_call.1} parent=67 // pred_fallthru
          _
      $region68: #{tpu_custom_call.1} parent=5 // pred_fallthru
        _
    $region6: #{tpu_custom_call.1} parent=1 // loop_footer
      %s24 = sadd.s32 1, %s20
    $region7: #{tpu_custom_call.1} parent=1 // loop_footer_branch
      %19 = sbr.rel target = $region3
    $region8: #{tpu_custom_call.1} parent=1 // loop_exit
      _
    %1173 = vsyncpa [#allocation5], 1
    %s1174 = scalar_lea.sflag [#allocation5], 1
    %1175 = vsyncpa %s1174, 1
    %1176 = vsyncpa [#allocation8], 1
    %1177 = vsyncpa [#allocation6], 1
    %s1178 = scalar_lea.sflag [#allocation6], 1
    %1179 = vsyncpa %s1178, 1

</llo_original>
